<compile_context>
chip_gen: v7x
topology: tpu7x:2x2x1
jax: 0.10.0
libtpu: 0.0.40
codegen_flags: <defaults>
</compile_context>

<pallas_src>
import functools

import jax
import jax.numpy as jnp
from jax.experimental import pallas as pl
from jax.experimental.pallas import tpu as pltpu

_NEG_BIG = -1e30      # pad-class bias; exp(pad - max) underflows to exactly 0.
_CLASS_PAD = 128      # each graph's class block is padded to a full 128-lane group.


def _gcn2_batched_kernel(a_ref, x_ref, w1_ref, b1_ref, w2_ref, b2_ref, out_ref,
                         *, num_graphs, class_pad):
    """Single-step fused 2-layer GCN with the batch folded into the lane axis.

    a_ref  : (N, N)       bf16  normalized adjacency Â (shared by all graphs)
    x_ref  : (N, B*F)     bf16  node features, graph-major column blocks
    w1_ref : (B*F, B*H)   bf16  block-diag(W1)  -> one XW dot for all graphs
    b1_ref : (1, B*H)     f32   tiled bias 1
    w2_ref : (B*H, B*CP)  bf16  block-diag(W2 padded to CP classes)
    b2_ref : (1, B*CP)    f32   tiled bias 2 (-1e30 on pad classes)
    out_ref: (N, B*CP)    bf16  per-graph log_softmax, graph-major column blocks
    """
    a = a_ref[...]
    x = x_ref[...]

    # ---- Layer 1: h = relu(Â @ (X @ W1) + b1); f32 accumulation on the MXU ----
    xw = jnp.dot(x, w1_ref[...], preferred_element_type=jnp.float32)        # (N, B*H)
    h = jnp.dot(a, xw.astype(a.dtype), preferred_element_type=jnp.float32)
    h = jnp.maximum(h + b1_ref[...], 0.0)

    # TODO(synk): F.dropout(training=True) omitted; identity (eval-mode) used.

    # ---- Layer 2, reassociated as (Â @ h) @ W2 so the O(N^2) propagation runs
    #      over B*H (=128) lanes instead of the padded B*CP (=512). ----
    ah = jnp.dot(a, h.astype(a.dtype), preferred_element_type=jnp.float32)  # (N, B*H)
    z = jnp.dot(ah.astype(w2_ref.dtype), w2_ref[...],
                preferred_element_type=jnp.float32) + b2_ref[...]           # (N, B*CP)

    # ---- Per-graph log_softmax over each 128-lane class group.  Pad columns
    #      hold -1e30 so exp() contributes exactly 0; every store is a full-lane
    #      (unmasked) bf16 vst.  Static unroll over B (trace-time constant). ----
    for g in range(num_graphs):
        lo = g * class_pad
        zg = z[:, lo:lo + class_pad]
        m = jnp.max(zg, axis=1, keepdims=True)
        lse = m + jnp.log(jnp.sum(jnp.exp(zg - m), axis=1, keepdims=True))
        out_ref[:, lo:lo + class_pad] = (zg - lse).astype(out_ref.dtype)


def _pack_operands(a_hat, x_batched, w1, b1, w2, b2, class_pad):
    """Plain-JAX glue: fold the batch into lanes & build block-diagonal weights."""
    b_graphs, n, f = x_batched.shape
    hid = w1.shape[1]
    c = w2.shape[1]
    cp = class_pad

    a_bf = a_hat.astype(jnp.bfloat16)
    # (B, N, F) -> (N, B*F): batch folded into the lane axis, graph-major blocks.
    x_fold = jnp.transpose(x_batched, (1, 0, 2)).reshape(n, b_graphs * f)
    x_fold = x_fold.astype(jnp.bfloat16)

    eye_b = jnp.eye(b_graphs, dtype=jnp.float32)
    w1_bd = jnp.kron(eye_b, w1.astype(jnp.float32)).astype(jnp.bfloat16)    # (B*F, B*H)
    w2_pad = jnp.zeros((hid, cp), jnp.float32).at[:, :c].set(w2.astype(jnp.float32))
    w2_bd = jnp.kron(eye_b, w2_pad).astype(jnp.bfloat16)                    # (B*H, B*CP)

    b1_t = jnp.tile(b1.astype(jnp.float32).reshape(1, hid), (1, b_graphs))  # (1, B*H)
    b2_pad = jnp.full((1, cp), _NEG_BIG, jnp.float32).at[:, :c].set(
        b2.astype(jnp.float32).reshape(1, c))
    b2_t = jnp.tile(b2_pad, (1, b_graphs))                                  # (1, B*CP)
    return a_bf, x_fold, w1_bd, b1_t, w2_bd, b2_t


def contender_gcn_forward(a_hat, x_batched, w1, b1, w2, b2, *, class_pad=_CLASS_PAD,
                          out_dtype=jnp.bfloat16):
    """x_batched: (B, N, F).  Returns (B, N, C) per-graph log-softmax outputs."""
    b_graphs, n, f = x_batched.shape
    hid = w1.shape[1]
    c = w2.shape[1]
    cp = max(class_pad, c)

    a_bf, x_fold, w1_bd, b1_t, w2_bd, b2_t = _pack_operands(
        a_hat, x_batched, w1, b1, w2, b2, cp)

    kernel = functools.partial(_gcn2_batched_kernel,
                               num_graphs=b_graphs, class_pad=cp)

    # Explicit scoped-VMEM limit with headroom: ~75% of physical VMEM.  Raises
    # v5e's 16 MiB default, keeps headroom under v7x's 64 MiB physical.
    try:
        vmem_limit = int(pltpu.get_tpu_info().vmem_capacity_bytes * 3 // 4)
    except Exception:
        vmem_limit = 48 * 1024 * 1024

    grid_spec = pltpu.PrefetchScalarGridSpec(
        num_scalar_prefetch=0,
        grid=(1,),                          # single fused step: batch is in lanes
        in_specs=[
            pl.BlockSpec((n, n), lambda i: (0, 0)),                              # Â
            pl.BlockSpec((n, b_graphs * f), lambda i: (0, 0)),                   # X fold
            pl.BlockSpec((b_graphs * f, b_graphs * hid), lambda i: (0, 0)),      # W1 bd
            pl.BlockSpec((1, b_graphs * hid), lambda i: (0, 0)),                 # b1
            pl.BlockSpec((b_graphs * hid, b_graphs * cp), lambda i: (0, 0)),     # W2 bd
            pl.BlockSpec((1, b_graphs * cp), lambda i: (0, 0)),                  # b2
        ],
        out_specs=pl.BlockSpec((n, b_graphs * cp), lambda i: (0, 0)),
    )

    out_fold = pl.pallas_call(
        kernel,
        out_shape=jax.ShapeDtypeStruct((n, b_graphs * cp), out_dtype),
        grid_spec=grid_spec,
        compiler_params=pltpu.CompilerParams(
            dimension_semantics=("arbitrary",),
            vmem_limit_bytes=vmem_limit,
        ),
    )(a_bf, x_fold, w1_bd, b1_t, w2_bd, b2_t)

    # Unfold (N, B*CP) -> (B, N, C) and drop the padded classes (cheap XLA glue).
    return out_fold.reshape(n, b_graphs, cp).transpose(1, 0, 2)[:, :, :c]


def build_normalized_adjacency(edge_index, num_nodes):
    """Dense Â = D^{-1/2}(A + I_remaining)D^{-1/2} (PyG GCNConv gcn_norm).

    Self-loops are only added for nodes that do not already have one
    (add_remaining_self_loops semantics), per the correctness review.
    """
    src, dst = edge_index
    adj = jnp.zeros((num_nodes, num_nodes), jnp.float32)
    adj = adj.at[dst, src].add(1.0)                      # message flows src -> dst
    diag = jnp.diagonal(adj)
    adj = adj + jnp.diag(jnp.where(diag > 0.0, 0.0, 1.0))
    deg = jnp.sum(adj, axis=1)
    dinv = jnp.where(deg > 0, 1.0 / jnp.sqrt(deg), 0.0)
    return dinv[:, None] * adj * dinv[None, :]


def reference_forward(a_hat, x_batched, w1, b1, w2, b2, *, class_pad=_CLASS_PAD,
                      out_dtype=jnp.bfloat16):
    """Plain-JAX reference mirroring the kernel's folded bf16/f32 cast pattern."""
    b_graphs, n, f = x_batched.shape
    c = w2.shape[1]
    cp = max(class_pad, c)
    a_bf, x_fold, w1_bd, b1_t, w2_bd, b2_t = _pack_operands(
        a_hat, x_batched, w1, b1, w2, b2, cp)

    xw = jnp.dot(x_fold, w1_bd, preferred_element_type=jnp.float32)
    h = jnp.maximum(
        jnp.dot(a_bf, xw.astype(jnp.bfloat16), preferred_element_type=jnp.float32) + b1_t,
        0.0)
    ah = jnp.dot(a_bf, h.astype(jnp.bfloat16), preferred_element_type=jnp.float32)
    z = jnp.dot(ah.astype(jnp.bfloat16), w2_bd, preferred_element_type=jnp.float32) + b2_t
    z = z.reshape(n, b_graphs, cp)
    out = jax.nn.log_softmax(z, axis=-1).astype(out_dtype)
    return out.transpose(1, 0, 2)[:, :, :c]


def reference_forward_f32(a_hat, x_batched, w1, b1, w2, b2):
    """Pure-f32 math of the original module (original association, no folding)."""
    def single(xb):
        hh = jnp.maximum(a_hat @ (xb @ w1) + b1, 0.0)
        z = a_hat @ (hh @ w2) + b2
        return jax.nn.log_softmax(z, axis=1)
    return jax.vmap(single)(x_batched)


if __name__ == "__main__":
    # Small synthetic problem: B=4 feature sets over one 16-node graph,
    # input_dim=8, hidden_dim=32, output_dim=4.
    batch, num_nodes, input_dim, hidden_dim, output_dim = 4, 16, 8, 32, 4

    key = jax.random.PRNGKey(0)
    k_x, k_w1, k_w2, k_e = jax.random.split(key, 4)

    # Deterministic edge_index: ring graph + a few random extra edges (both dirs).
    ring_src = jnp.arange(num_nodes, dtype=jnp.int32)
    ring_dst = (ring_src + 1) % num_nodes
    extra = jax.random.randint(k_e, (2, 8), 0, num_nodes, dtype=jnp.int32)
    src = jnp.concatenate([ring_src, ring_dst, extra[0], extra[1]])
    dst = jnp.concatenate([ring_dst, ring_src, extra[1], extra[0]])
    edge_index = jnp.stack([src, dst])

    a_hat = build_normalized_adjacency(edge_index, num_nodes)

    # Node features (batched) and deterministic (glorot-ish) parameters.
    x = jax.random.normal(k_x, (batch, num_nodes, input_dim), jnp.float32)
    w1 = jax.random.normal(k_w1, (input_dim, hidden_dim), jnp.float32) * (
        1.0 / jnp.sqrt(float(input_dim)))
    b1 = jnp.zeros((1, hidden_dim), jnp.float32)
    w2 = jax.random.normal(k_w2, (hidden_dim, output_dim), jnp.float32) * (
        1.0 / jnp.sqrt(float(hidden_dim)))
    b2 = jnp.zeros((1, output_dim), jnp.float32)

    out = contender_gcn_forward(a_hat, x, w1, b1, w2, b2)
    out = jax.block_until_ready(out)
    assert out.shape == (batch, num_nodes, output_dim)

    # Tight check against a reference with the identical fold / cast pattern.
    ref = reference_forward(a_hat, x, w1, b1, w2, b2)
    assert jnp.allclose(out.astype(jnp.float32), ref.astype(jnp.float32),
                        atol=2e-2, rtol=2e-2), "mismatch vs bf16 reference"

    # Loose sanity check against the pure-f32 math of the original module.
    ref32 = reference_forward_f32(a_hat, x, w1, b1, w2, b2)
    assert float(jnp.max(jnp.abs(out.astype(jnp.float32) - ref32))) < 0.15, \
        "mismatch vs f32 reference"

    print("KERNEL_OK")
</pallas_src>

<mosaic_0001>
module attributes {stable_mosaic.version = 11 : i64} {
  func.func @_gcn2_batched_kernel(%arg0: i32, %arg1: memref<16x16xbf16, #tpu.memory_space<vmem>>, %arg2: memref<16x32xbf16, #tpu.memory_space<vmem>>, %arg3: memref<32x128xbf16, #tpu.memory_space<vmem>>, %arg4: memref<1x128xf32, #tpu.memory_space<vmem>>, %arg5: memref<128x512xbf16, #tpu.memory_space<vmem>>, %arg6: memref<1x512xf32, #tpu.memory_space<vmem>>, %arg7: memref<16x512xbf16, #tpu.memory_space<vmem>>) attributes {dimension_semantics = [#tpu.dimension_semantics<arbitrary>], iteration_bounds = array<i64: 1>, scalar_prefetch = 0 : i64, scratch_operands = 0 : i64, tpu.core_type = #tpu.core_type<tc>, window_params = [{pipeline_mode = #tpu.pipeline_mode<synchronous>, transform_indices = @transform_0, window_bounds = array<i64: 16, 16>}, {pipeline_mode = #tpu.pipeline_mode<synchronous>, transform_indices = @transform_1, window_bounds = array<i64: 16, 32>}, {pipeline_mode = #tpu.pipeline_mode<synchronous>, transform_indices = @transform_2, window_bounds = array<i64: 32, 128>}, {pipeline_mode = #tpu.pipeline_mode<synchronous>, transform_indices = @transform_3, window_bounds = array<i64: 1, 128>}, {pipeline_mode = #tpu.pipeline_mode<synchronous>, transform_indices = @transform_4, window_bounds = array<i64: 128, 512>}, {pipeline_mode = #tpu.pipeline_mode<synchronous>, transform_indices = @transform_5, window_bounds = array<i64: 1, 512>}, {pipeline_mode = #tpu.pipeline_mode<synchronous>, transform_indices = @transform_6, window_bounds = array<i64: 16, 512>}]} {
    %c0 = arith.constant 0 : index
    %c0_0 = arith.constant 0 : index
    %0 = vector.load %arg1[%c0, %c0_0] : memref<16x16xbf16, #tpu.memory_space<vmem>>, vector<16x16xbf16>
    %c0_1 = arith.constant 0 : index
    %c0_2 = arith.constant 0 : index
    %1 = vector.load %arg2[%c0_1, %c0_2] : memref<16x32xbf16, #tpu.memory_space<vmem>>, vector<16x32xbf16>
    %c0_3 = arith.constant 0 : index
    %c0_4 = arith.constant 0 : index
    %2 = vector.load %arg3[%c0_3, %c0_4] : memref<32x128xbf16, #tpu.memory_space<vmem>>, vector<32x128xbf16>
    %cst = arith.constant dense<0.000000e+00> : vector<16x128xf32>
    %3 = tpu.matmul %1, %2, %cst {dimension_numbers = #tpu.dot_dimension_numbers<[1], [0], [0], [1], [0, 0, 1, 1], [], []>} : vector<16x32xbf16>, vector<32x128xbf16>, vector<16x128xf32> -> vector<16x128xf32>
    %4 = arith.truncf %3 : vector<16x128xf32> to vector<16x128xbf16>
    %cst_5 = arith.constant dense<0.000000e+00> : vector<16x128xf32>
    %5 = tpu.matmul %0, %4, %cst_5 {dimension_numbers = #tpu.dot_dimension_numbers<[1], [0], [0], [1], [0, 0, 1, 1], [], []>} : vector<16x16xbf16>, vector<16x128xbf16>, vector<16x128xf32> -> vector<16x128xf32>
    %c0_6 = arith.constant 0 : index
    %c0_7 = arith.constant 0 : index
    %6 = vector.load %arg4[%c0_6, %c0_7] : memref<1x128xf32, #tpu.memory_space<vmem>>, vector<1x128xf32>
    %7 = vector.broadcast %6 : vector<1x128xf32> to vector<16x128xf32>
    %8 = arith.addf %5, %7 : vector<16x128xf32>
    %cst_8 = arith.constant 0.000000e+00 : f32
    %9 = vector.broadcast %cst_8 : f32 to vector<16x128xf32>
    %10 = arith.maximumf %8, %9 : vector<16x128xf32>
    %11 = arith.truncf %10 : vector<16x128xf32> to vector<16x128xbf16>
    %cst_9 = arith.constant dense<0.000000e+00> : vector<16x128xf32>
    %12 = tpu.matmul %0, %11, %cst_9 {dimension_numbers = #tpu.dot_dimension_numbers<[1], [0], [0], [1], [0, 0, 1, 1], [], []>} : vector<16x16xbf16>, vector<16x128xbf16>, vector<16x128xf32> -> vector<16x128xf32>
    %13 = arith.truncf %12 : vector<16x128xf32> to vector<16x128xbf16>
    %c0_10 = arith.constant 0 : index
    %c0_11 = arith.constant 0 : index
    %14 = vector.load %arg5[%c0_10, %c0_11] : memref<128x512xbf16, #tpu.memory_space<vmem>>, vector<128x512xbf16>
    %cst_12 = arith.constant dense<0.000000e+00> : vector<16x512xf32>
    %15 = tpu.matmul %13, %14, %cst_12 {dimension_numbers = #tpu.dot_dimension_numbers<[1], [0], [0], [1], [0, 0, 1, 1], [], []>} : vector<16x128xbf16>, vector<128x512xbf16>, vector<16x512xf32> -> vector<16x512xf32>
    %c0_13 = arith.constant 0 : index
    %c0_14 = arith.constant 0 : index
    %16 = vector.load %arg6[%c0_13, %c0_14] : memref<1x512xf32, #tpu.memory_space<vmem>>, vector<1x512xf32>
    %17 = vector.broadcast %16 : vector<1x512xf32> to vector<16x512xf32>
    %18 = arith.addf %15, %17 : vector<16x512xf32>
    %19 = vector.extract_strided_slice %18 {offsets = [0, 0], sizes = [16, 128], strides = [1, 1]} : vector<16x512xf32> to vector<16x128xf32>
    %cst_15 = arith.constant dense<0xFF800000> : vector<16xf32>
    %20 = vector.multi_reduction <maximumf>, %19, %cst_15 [1] : vector<16x128xf32> to vector<16xf32>
    %21 = vector.shape_cast %20 : vector<16xf32> to vector<16x1xf32>
    %22 = vector.broadcast %21 : vector<16x1xf32> to vector<16x128xf32>
    %23 = arith.subf %19, %22 : vector<16x128xf32>
    %24 = math.exp %23 : vector<16x128xf32>
    %cst_16 = arith.constant dense<0.000000e+00> : vector<16xf32>
    %25 = vector.multi_reduction <add>, %24, %cst_16 [1] : vector<16x128xf32> to vector<16xf32>
    %26 = vector.shape_cast %25 : vector<16xf32> to vector<16x1xf32>
    %27 = math.log %26 : vector<16x1xf32>
    %28 = arith.addf %21, %27 : vector<16x1xf32>
    %29 = vector.broadcast %28 : vector<16x1xf32> to vector<16x128xf32>
    %30 = arith.subf %19, %29 : vector<16x128xf32>
    %31 = arith.truncf %30 : vector<16x128xf32> to vector<16x128xbf16>
    %c0_17 = arith.constant 0 : index
    %c0_18 = arith.constant 0 : index
    %32 = vector.load %arg7[%c0_17, %c0_18] : memref<16x512xbf16, #tpu.memory_space<vmem>>, vector<16x128xbf16>
    tpu.vector_store %arg7[%c0_17, %c0_18], %31 {strides = array<i32>} : memref<16x512xbf16, #tpu.memory_space<vmem>>, vector<16x128xbf16>,
    %33 = vector.extract_strided_slice %18 {offsets = [0, 128], sizes = [16, 128], strides = [1, 1]} : vector<16x512xf32> to vector<16x128xf32>
    %cst_19 = arith.constant dense<0xFF800000> : vector<16xf32>
    %34 = vector.multi_reduction <maximumf>, %33, %cst_19 [1] : vector<16x128xf32> to vector<16xf32>
    %35 = vector.shape_cast %34 : vector<16xf32> to vector<16x1xf32>
    %36 = vector.broadcast %35 : vector<16x1xf32> to vector<16x128xf32>
    %37 = arith.subf %33, %36 : vector<16x128xf32>
    %38 = math.exp %37 : vector<16x128xf32>
    %cst_20 = arith.constant dense<0.000000e+00> : vector<16xf32>
    %39 = vector.multi_reduction <add>, %38, %cst_20 [1] : vector<16x128xf32> to vector<16xf32>
    %40 = vector.shape_cast %39 : vector<16xf32> to vector<16x1xf32>
    %41 = math.log %40 : vector<16x1xf32>
    %42 = arith.addf %35, %41 : vector<16x1xf32>
    %43 = vector.broadcast %42 : vector<16x1xf32> to vector<16x128xf32>
    %44 = arith.subf %33, %43 : vector<16x128xf32>
    %45 = arith.truncf %44 : vector<16x128xf32> to vector<16x128xbf16>
    %c0_21 = arith.constant 0 : index
    %c128 = arith.constant 128 : index
    %46 = vector.load %arg7[%c0_21, %c128] : memref<16x512xbf16, #tpu.memory_space<vmem>>, vector<16x128xbf16>
    tpu.vector_store %arg7[%c0_21, %c128], %45 {strides = array<i32>} : memref<16x512xbf16, #tpu.memory_space<vmem>>, vector<16x128xbf16>,
    %47 = vector.extract_strided_slice %18 {offsets = [0, 256], sizes = [16, 128], strides = [1, 1]} : vector<16x512xf32> to vector<16x128xf32>
    %cst_22 = arith.constant dense<0xFF800000> : vector<16xf32>
    %48 = vector.multi_reduction <maximumf>, %47, %cst_22 [1] : vector<16x128xf32> to vector<16xf32>
    %49 = vector.shape_cast %48 : vector<16xf32> to vector<16x1xf32>
    %50 = vector.broadcast %49 : vector<16x1xf32> to vector<16x128xf32>
    %51 = arith.subf %47, %50 : vector<16x128xf32>
    %52 = math.exp %51 : vector<16x128xf32>
    %cst_23 = arith.constant dense<0.000000e+00> : vector<16xf32>
    %53 = vector.multi_reduction <add>, %52, %cst_23 [1] : vector<16x128xf32> to vector<16xf32>
    %54 = vector.shape_cast %53 : vector<16xf32> to vector<16x1xf32>
    %55 = math.log %54 : vector<16x1xf32>
    %56 = arith.addf %49, %55 : vector<16x1xf32>
    %57 = vector.broadcast %56 : vector<16x1xf32> to vector<16x128xf32>
    %58 = arith.subf %47, %57 : vector<16x128xf32>
    %59 = arith.truncf %58 : vector<16x128xf32> to vector<16x128xbf16>
    %c0_24 = arith.constant 0 : index
    %c256 = arith.constant 256 : index
    %60 = vector.load %arg7[%c0_24, %c256] : memref<16x512xbf16, #tpu.memory_space<vmem>>, vector<16x128xbf16>
    tpu.vector_store %arg7[%c0_24, %c256], %59 {strides = array<i32>} : memref<16x512xbf16, #tpu.memory_space<vmem>>, vector<16x128xbf16>,
    %61 = vector.extract_strided_slice %18 {offsets = [0, 384], sizes = [16, 128], strides = [1, 1]} : vector<16x512xf32> to vector<16x128xf32>
    %cst_25 = arith.constant dense<0xFF800000> : vector<16xf32>
    %62 = vector.multi_reduction <maximumf>, %61, %cst_25 [1] : vector<16x128xf32> to vector<16xf32>
    %63 = vector.shape_cast %62 : vector<16xf32> to vector<16x1xf32>
    %64 = vector.broadcast %63 : vector<16x1xf32> to vector<16x128xf32>
    %65 = arith.subf %61, %64 : vector<16x128xf32>
    %66 = math.exp %65 : vector<16x128xf32>
    %cst_26 = arith.constant dense<0.000000e+00> : vector<16xf32>
    %67 = vector.multi_reduction <add>, %66, %cst_26 [1] : vector<16x128xf32> to vector<16xf32>
    %68 = vector.shape_cast %67 : vector<16xf32> to vector<16x1xf32>
    %69 = math.log %68 : vector<16x1xf32>
    %70 = arith.addf %63, %69 : vector<16x1xf32>
    %71 = vector.broadcast %70 : vector<16x1xf32> to vector<16x128xf32>
    %72 = arith.subf %61, %71 : vector<16x128xf32>
    %73 = arith.truncf %72 : vector<16x128xf32> to vector<16x128xbf16>
    %c0_27 = arith.constant 0 : index
    %c384 = arith.constant 384 : index
    %74 = vector.load %arg7[%c0_27, %c384] : memref<16x512xbf16, #tpu.memory_space<vmem>>, vector<16x128xbf16>
    tpu.vector_store %arg7[%c0_27, %c384], %73 {strides = array<i32>} : memref<16x512xbf16, #tpu.memory_space<vmem>>, vector<16x128xbf16>,
    return
  }
  func.func @transform_0(%arg0: i32) -> (i32, i32) {
    %c0_i32 = arith.constant 0 : i32
    %c0_i32_0 = arith.constant 0 : i32
    %c0_i32_1 = arith.constant 0 : i32
    return %c0_i32, %c0_i32_0 : i32, i32
  }
  func.func @transform_1(%arg0: i32) -> (i32, i32) {
    %c0_i32 = arith.constant 0 : i32
    %c0_i32_0 = arith.constant 0 : i32
    %c0_i32_1 = arith.constant 0 : i32
    return %c0_i32, %c0_i32_0 : i32, i32
  }
  func.func @transform_2(%arg0: i32) -> (i32, i32) {
    %c0_i32 = arith.constant 0 : i32
    %c0_i32_0 = arith.constant 0 : i32
    %c0_i32_1 = arith.constant 0 : i32
    return %c0_i32, %c0_i32_0 : i32, i32
  }
  func.func @transform_3(%arg0: i32) -> (i32, i32) {
    %c0_i32 = arith.constant 0 : i32
    %c0_i32_0 = arith.constant 0 : i32
    %c0_i32_1 = arith.constant 0 : i32
    return %c0_i32, %c0_i32_0 : i32, i32
  }
  func.func @transform_4(%arg0: i32) -> (i32, i32) {
    %c0_i32 = arith.constant 0 : i32
    %c0_i32_0 = arith.constant 0 : i32
    %c0_i32_1 = arith.constant 0 : i32
    return %c0_i32, %c0_i32_0 : i32, i32
  }
  func.func @transform_5(%arg0: i32) -> (i32, i32) {
    %c0_i32 = arith.constant 0 : i32
    %c0_i32_0 = arith.constant 0 : i32
    %c0_i32_1 = arith.constant 0 : i32
    return %c0_i32, %c0_i32_0 : i32, i32
  }
  func.func @transform_6(%arg0: i32) -> (i32, i32) {
    %c0_i32 = arith.constant 0 : i32
    %c0_i32_0 = arith.constant 0 : i32
    %c0_i32_1 = arith.constant 0 : i32
    return %c0_i32, %c0_i32_0 : i32, i32
  }
}

</mosaic_0001>

<llo_original>
// kernel: tpu_custom_call.1
$region0: #{tpu_custom_call.1}
  #allocation0 [shape = 'u32[]', space=smem, size = 0x4, offset = 0x4, fixed_abs, tag = 'smem constant byte address 0x4 - core index']
  #allocation1 [shape = 'u32[144,128]{1,0:T(1,128)}', space=vmem, size = 0x12000, scoped, tag = 'internal scratch']
  %s0 = inlined_call_operand.hbm [shape: bf16[16,16], index: 0, kind: input, shape index: {}]
  %s1 = inlined_call_operand.hbm [shape: bf16[16,32], index: 1, kind: input, shape index: {}]
  %s2 = inlined_call_operand.hbm [shape: bf16[32,128], index: 2, kind: input, shape index: {}]
  %s3 = inlined_call_operand.vmem [shape: f32[1,128], index: 3, kind: input, shape index: {}]
  %s4 = inlined_call_operand.hbm [shape: bf16[128,512], index: 4, kind: input, shape index: {}]
  %s5 = inlined_call_operand.vmem [shape: f32[1,512], index: 5, kind: input, shape index: {}]
  %s6 = inlined_call_operand.hbm [shape: bf16[16,512], index: 6, kind: output, shape index: {}]
  %s7 = sld [smem:[#allocation0]]
  $region50: #{tpu_custom_call.1} parent=0
    _
  %s9 = ssub.s32 1, %s7
  %s10 = scalar_select 0, %s9, %s7
  $region1: #{tpu_custom_call.1} parent=0
    #allocation2 [shape = 'u8[4096]{0}', space=vmem, size = 0x1000, scoped, tag = 'input window, operand 0, single buffered']
    #allocation3 [shape = 's32[1]{0}', space=sflag, size = 0x4, scoped, tag = 'scoped memory for tpu_custom_call.1']
    #allocation4 [shape = 's32[1]{0}', space=sflag, size = 0x4, scoped, tag = 'scoped memory for tpu_custom_call.1']
    #allocation5 [shape = 'u8[4096]{0}', space=vmem, size = 0x1000, scoped, tag = 'input window, operand 1, single buffered']
    #allocation6 [shape = 's32[1]{0}', space=sflag, size = 0x4, scoped, tag = 'scoped memory for tpu_custom_call.1']
    #allocation7 [shape = 'u8[8192]{0}', space=vmem, size = 0x2000, scoped, tag = 'input window, operand 2, single buffered']
    #allocation8 [shape = 'u8[131072]{0}', space=vmem, size = 0x20000, scoped, tag = 'input window, operand 4, single buffered']
    #allocation9 [shape = 's32[1]{0}', space=sflag, size = 0x4, scoped, tag = 'scoped memory for tpu_custom_call.1']
    #allocation10 [shape = 'u8[16384]{0}', space=vmem, size = 0x4000, scoped, tag = 'output window, operand 0, single buffered']
    %11 = vsyncpa [#allocation3], 0
    %12 = vsyncpa [#allocation6], 0
    %13 = vsyncpa [#allocation9], 0
    %14 = vsyncpa [#allocation4], 0
    // Predicated region
    $region2: #{tpu_custom_call.1} parent=1 // pred_check
      _
    $region3: #{tpu_custom_call.1} parent=1 // pred_check_branch
      %16 = sbr.rel (0) target = $region5
    $region4: #{tpu_custom_call.1} parent=1 // pred_region
      %s18 = ssub.s32 128, 128
      %19 = vsyncadd [#allocation3], %s18
      %s20 = sshll.u32 [#allocation2], 4
      %s21 = int_to_ptr.vmem [resolvable:$true] %s20
      %26 = dma.hbm_to_vmem [thread:$0]  %s0, 128, %s21, [#allocation3], 64, 64, 4
    $region5: #{tpu_custom_call.1} parent=1 // pred_fallthru
      _
    // Predicated region
    $region6: #{tpu_custom_call.1} parent=1 // pred_check
      _
    $region7: #{tpu_custom_call.1} parent=1 // pred_check_branch
      %28 = sbr.rel (0) target = $region9
    $region8: #{tpu_custom_call.1} parent=1 // pred_region
      %s30 = ssub.s32 128, 128
      %31 = vsyncadd [#allocation6], %s30
      %s32 = sshll.u32 [#allocation5], 4
      %s33 = int_to_ptr.vmem [resolvable:$true] %s32
      %38 = dma.hbm_to_vmem [thread:$0]  %s1, 128, %s33, [#allocation6], 64, 64, 4
    $region9: #{tpu_custom_call.1} parent=1 // pred_fallthru
      _
    // Predicated region
    $region10: #{tpu_custom_call.1} parent=1 // pred_check
      _
    $region11: #{tpu_custom_call.1} parent=1 // pred_check_branch
      %40 = sbr.rel (0) target = $region13
    $region12: #{tpu_custom_call.1} parent=1 // pred_region
      %s42 = ssub.s32 256, 256
      %43 = vsyncadd [#allocation6], %s42
      %s44 = sshll.u32 [#allocation7], 4
      %s45 = int_to_ptr.vmem [resolvable:$true] %s44
      %50 = dma.hbm_to_vmem [thread:$0]  %s2, 256, %s45, [#allocation6], 64, 64, 4
    $region13: #{tpu_custom_call.1} parent=1 // pred_fallthru
      _
    // Predicated region
    $region14: #{tpu_custom_call.1} parent=1 // pred_check
      _
    $region15: #{tpu_custom_call.1} parent=1 // pred_check_branch
      %52 = sbr.rel (0) target = $region17
    $region16: #{tpu_custom_call.1} parent=1 // pred_region
      _
    $region17: #{tpu_custom_call.1} parent=1 // pred_fallthru
      _
    // Predicated region
    $region18: #{tpu_custom_call.1} parent=1 // pred_check
      _
    $region19: #{tpu_custom_call.1} parent=1 // pred_check_branch
      %54 = sbr.rel (0) target = $region21
    $region20: #{tpu_custom_call.1} parent=1 // pred_region
      %s56 = ssub.s32 4096, 4096
      %57 = vsyncadd [#allocation9], %s56
      %s58 = sshll.u32 [#allocation8], 4
      %s59 = int_to_ptr.vmem [resolvable:$true] %s58
      %64 = dma.hbm_to_vmem [thread:$0]  %s4, 4096, %s59, [#allocation9], 256, 256, 16
    $region21: #{tpu_custom_call.1} parent=1 // pred_fallthru
      _
    // Predicated region
    $region22: #{tpu_custom_call.1} parent=1 // pred_check
      _
    $region23: #{tpu_custom_call.1} parent=1 // pred_check_branch
      %66 = sbr.rel (0) target = $region25
    $region24: #{tpu_custom_call.1} parent=1 // pred_region
      _
    $region25: #{tpu_custom_call.1} parent=1 // pred_fallthru
      _
    // Predicated region
    $region26: #{tpu_custom_call.1} parent=1 // pred_check
      _
    $region27: #{tpu_custom_call.1} parent=1 // pred_check_branch
      %68 = sbr.rel (0) target = $region29
    $region28: #{tpu_custom_call.1} parent=1 // pred_region
      %69 = dma.done [#allocation3], 128
    $region29: #{tpu_custom_call.1} parent=1 // pred_fallthru
      _
    // Predicated region
    $region30: #{tpu_custom_call.1} parent=1 // pred_check
      _
    $region31: #{tpu_custom_call.1} parent=1 // pred_check_branch
      %71 = sbr.rel (0) target = $region33
    $region32: #{tpu_custom_call.1} parent=1 // pred_region
      %72 = dma.done [#allocation6], 128
    $region33: #{tpu_custom_call.1} parent=1 // pred_fallthru
      _
    // Predicated region
    $region34: #{tpu_custom_call.1} parent=1 // pred_check
      _
    $region35: #{tpu_custom_call.1} parent=1 // pred_check_branch
      %74 = sbr.rel (0) target = $region37
    $region36: #{tpu_custom_call.1} parent=1 // pred_region
      %75 = dma.done [#allocation6], 256
    $region37: #{tpu_custom_call.1} parent=1 // pred_fallthru
      _
    // Predicated region
    $region38: #{tpu_custom_call.1} parent=1 // pred_check
      _
    $region39: #{tpu_custom_call.1} parent=1 // pred_check_branch
      %77 = sbr.rel (0) target = $region41
    $region40: #{tpu_custom_call.1} parent=1 // pred_region
      %78 = dma.done [#allocation9], 4096
    $region41: #{tpu_custom_call.1} parent=1 // pred_fallthru
      _
    %v80 = vld [vmem:[#allocation2] sm:$0xf]
    %v81 = vld [vmem:[#allocation2 + $0x4] sm:$0xf]
    %v82 = vld [vmem:[#allocation5] sm:$0xf]
    %v83 = vld [vmem:[#allocation5 + $0x4] sm:$0xf]
    %v84 = vld [vmem:[#allocation7] sm:$0xf]
    %v85 = vld [vmem:[#allocation7 + $0x4] sm:$0xf]
    %v86 = vld [vmem:[#allocation7 + $0x8] sm:$0xf]
    %v87 = vld [vmem:[#allocation7 + $0xc] sm:$0xf]
    %v90 = vunpack.c.l.b16 %v82
    %v91 = vunpack.c.l.b16 %v83
    %v92 = vpack.c.b16 %v91, %v90
    %v97 = vunpack.c.l.b16 %v84
    %v98 = vunpack.c.l.b16 %v85
    %v99 = vunpack.c.l.b16 %v86
    %v100 = vunpack.c.l.b16 %v87
    %v101 = vpack.c.b16 %v98, %v97
    %v102 = vpack.c.b16 %v100, %v99
    %vm105 = vcmask 261120
    %v107 = vsel %vm105, %v92, 0
    %109 = vmatprep.subr.bf16.mxu0 0
    %110 = vmatpush1.bf16.msra.mxu0 %v101
    %111 = vmatprep.subr.bf16.mxu0 0
    %112 = vmatpush1.bf16.msra.mxu0 %v102
    %113 = vmatprep.subr.bf16.mxu0 0
    %114 = vmatpush1.bf16.msra.mxu0 0
    %115 = vmatprep.subr.bf16.mxu0 0
    %116 = vmatpush1.bf16.msra.mxu0 0
    %117 = vmatprep.subr.bf16.mxu0 0
    %118 = vmatpush1.bf16.msra.mxu0 0
    %119 = vmatprep.subr.bf16.mxu0 0
    %120 = vmatpush1.bf16.msra.mxu0 0
    %121 = vmatprep.subr.bf16.mxu0 0
    %122 = vmatpush1.bf16.msra.mxu0 0
    %123 = vmatprep.subr.bf16.mxu0 0
    %124 = vmatpush1.bf16.msra.mxu0 0
    %125 = vmatprep.subr.bf16.mxu0 0
    %126 = vmatpush1.bf16.msra.mxu0 0
    %127 = vmatprep.subr.bf16.mxu0 0
    %128 = vmatpush1.bf16.msra.mxu0 0
    %129 = vmatprep.subr.bf16.mxu0 0
    %130 = vmatpush1.bf16.msra.mxu0 0
    %131 = vmatprep.subr.bf16.mxu0 0
    %132 = vmatpush1.bf16.msra.mxu0 0
    %133 = vmatprep.subr.bf16.mxu0 0
    %134 = vmatpush1.bf16.msra.mxu0 0
    %135 = vmatprep.subr.bf16.mxu0 0
    %136 = vmatpush1.bf16.msra.mxu0 0
    %137 = vmatprep.subr.bf16.mxu0 0
    %138 = vmatpush1.bf16.msra.mxu0 0
    %139 = vmatprep.subr.bf16.mxu0 0
    %140 = vmatpush1.bf16.msra.mxu0 0
    %141 = vmatprep.mubr.bf16.mxu0 0
    %142 = vmatmul.mubr.bf16.gmra.mrb[0].mxu0 %v107
    %v143 = vpop.f32.mrb[0].mxu0
    %v144 = vadd.f32 0.0, %v143
    %v145 = vpop.f32.mrb[0].mxu0
    %v146 = vpop.f32.mrb[0].mxu0
    %v147 = vadd.f32 0.0, %v146
    %v148 = vpop.f32.mrb[0].mxu0
    %149 = vdwg.mxu0
    %v150 = vpack.c.bf16 %v147, %v144
    %v151 = vld [vmem:[%s3] sm:$0x1]
    %v153 = vlaneseq
    %v154 = vshrl.u32 %v153, 7
    %v155 = vsub.s32 0, %v154
    %v156 = vrot.slane %v151, %v155
    %v160 = vunpack.c.l.b16 %v80
    %v161 = vunpack.c.l.b16 %v81
    %v162 = vpack.c.b16 %v161, %v160
    %vm163 = vcmask 130048
    %v165 = vsel %vm163, %v162, 0
    %167 = vmatprep.subr.bf16.mxu0 0
    %168 = vmatpush1.bf16.msra.mxu0 %v150
    %169 = vmatprep.subr.bf16.mxu0 0
    %170 = vmatpush1.bf16.msra.mxu0 0
    %171 = vmatprep.subr.bf16.mxu0 0
    %172 = vmatpush1.bf16.msra.mxu0 0
    %173 = vmatprep.subr.bf16.mxu0 0
    %174 = vmatpush1.bf16.msra.mxu0 0
    %175 = vmatprep.subr.bf16.mxu0 0
    %176 = vmatpush1.bf16.msra.mxu0 0
    %177 = vmatprep.subr.bf16.mxu0 0
    %178 = vmatpush1.bf16.msra.mxu0 0
    %179 = vmatprep.subr.bf16.mxu0 0
    %180 = vmatpush1.bf16.msra.mxu0 0
    %181 = vmatprep.subr.bf16.mxu0 0
    %182 = vmatpush1.bf16.msra.mxu0 0
    %183 = vmatprep.subr.bf16.mxu0 0
    %184 = vmatpush1.bf16.msra.mxu0 0
    %185 = vmatprep.subr.bf16.mxu0 0
    %186 = vmatpush1.bf16.msra.mxu0 0
    %187 = vmatprep.subr.bf16.mxu0 0
    %188 = vmatpush1.bf16.msra.mxu0 0
    %189 = vmatprep.subr.bf16.mxu0 0
    %190 = vmatpush1.bf16.msra.mxu0 0
    %191 = vmatprep.subr.bf16.mxu0 0
    %192 = vmatpush1.bf16.msra.mxu0 0
    %193 = vmatprep.subr.bf16.mxu0 0
    %194 = vmatpush1.bf16.msra.mxu0 0
    %195 = vmatprep.subr.bf16.mxu0 0
    %196 = vmatpush1.bf16.msra.mxu0 0
    %197 = vmatprep.subr.bf16.mxu0 0
    %198 = vmatpush1.bf16.msra.mxu0 0
    %199 = vmatprep.mubr.bf16.mxu0 0
    %200 = vmatmul.mubr.bf16.gmra.mrb[0].mxu0 %v165
    %v201 = vpop.f32.mrb[0].mxu0
    %v202 = vadd.f32 %v156, %v201
    %v203 = vpop.f32.mrb[0].mxu0
    %v204 = vpop.f32.mrb[0].mxu0
    %v205 = vadd.f32 %v156, %v204
    %v206 = vpop.f32.mrb[0].mxu0
    %207 = vdwg.mxu0
    %v208 = vmax.f32 %v202, 0.0
    %v209 = vmax.f32 %v205, 0.0
    %v210 = vpack.c.bf16 %v209, %v208
    %211 = vmatprep.subr.bf16.mxu0 0
    %212 = vmatpush1.bf16.msra.mxu0 %v210
    %213 = vmatprep.subr.bf16.mxu0 0
    %214 = vmatpush1.bf16.msra.mxu0 0
    %215 = vmatprep.subr.bf16.mxu0 0
    %216 = vmatpush1.bf16.msra.mxu0 0
    %217 = vmatprep.subr.bf16.mxu0 0
    %218 = vmatpush1.bf16.msra.mxu0 0
    %219 = vmatprep.subr.bf16.mxu0 0
    %220 = vmatpush1.bf16.msra.mxu0 0
    %221 = vmatprep.subr.bf16.mxu0 0
    %222 = vmatpush1.bf16.msra.mxu0 0
    %223 = vmatprep.subr.bf16.mxu0 0
    %224 = vmatpush1.bf16.msra.mxu0 0
    %225 = vmatprep.subr.bf16.mxu0 0
    %226 = vmatpush1.bf16.msra.mxu0 0
    %227 = vmatprep.subr.bf16.mxu0 0
    %228 = vmatpush1.bf16.msra.mxu0 0
    %229 = vmatprep.subr.bf16.mxu0 0
    %230 = vmatpush1.bf16.msra.mxu0 0
    %231 = vmatprep.subr.bf16.mxu0 0
    %232 = vmatpush1.bf16.msra.mxu0 0
    %233 = vmatprep.subr.bf16.mxu0 0
    %234 = vmatpush1.bf16.msra.mxu0 0
    %235 = vmatprep.subr.bf16.mxu0 0
    %236 = vmatpush1.bf16.msra.mxu0 0
    %237 = vmatprep.subr.bf16.mxu0 0
    %238 = vmatpush1.bf16.msra.mxu0 0
    %239 = vmatprep.subr.bf16.mxu0 0
    %240 = vmatpush1.bf16.msra.mxu0 0
    %241 = vmatprep.subr.bf16.mxu0 0
    %242 = vmatpush1.bf16.msra.mxu0 0
    %243 = vmatprep.mubr.bf16.mxu0 0
    %244 = vmatmul.mubr.bf16.gmra.mrb[0].mxu0 %v165
    %v245 = vpop.f32.mrb[0].mxu0
    %v246 = vadd.f32 0.0, %v245
    %v247 = vpop.f32.mrb[0].mxu0
    %v248 = vpop.f32.mrb[0].mxu0
    %v249 = vadd.f32 0.0, %v248
    %v250 = vpop.f32.mrb[0].mxu0
    %251 = vdwg.mxu0
    %v252 = vpack.c.bf16 %v249, %v246
    %v253 = vld [vmem:[#allocation8] sm:$0xff]
    %v254 = vld [vmem:[#allocation8 + $0x8] sm:$0xff]
    %v255 = vld [vmem:[#allocation8 + $0x10] sm:$0xff]
    %v256 = vld [vmem:[#allocation8 + $0x18] sm:$0xff]
    %v257 = vld [vmem:[#allocation8 + $0x20] sm:$0xff]
    %v258 = vld [vmem:[#allocation8 + $0x28] sm:$0xff]
    %v259 = vld [vmem:[#allocation8 + $0x30] sm:$0xff]
    %v260 = vld [vmem:[#allocation8 + $0x38] sm:$0xff]
    %v261 = vld [vmem:[#allocation8 + $0x40] sm:$0xff]
    %v262 = vld [vmem:[#allocation8 + $0x48] sm:$0xff]
    %v263 = vld [vmem:[#allocation8 + $0x50] sm:$0xff]
    %v264 = vld [vmem:[#allocation8 + $0x58] sm:$0xff]
    %v265 = vld [vmem:[#allocation8 + $0x60] sm:$0xff]
    %v266 = vld [vmem:[#allocation8 + $0x68] sm:$0xff]
    %v267 = vld [vmem:[#allocation8 + $0x70] sm:$0xff]
    %v268 = vld [vmem:[#allocation8 + $0x78] sm:$0xff]
    %v269 = vld [vmem:[#allocation8 + $0x80] sm:$0xff]
    %v270 = vld [vmem:[#allocation8 + $0x88] sm:$0xff]
    %v271 = vld [vmem:[#allocation8 + $0x90] sm:$0xff]
    %v272 = vld [vmem:[#allocation8 + $0x98] sm:$0xff]
    %v273 = vld [vmem:[#allocation8 + $0xa0] sm:$0xff]
    %v274 = vld [vmem:[#allocation8 + $0xa8] sm:$0xff]
    %v275 = vld [vmem:[#allocation8 + $0xb0] sm:$0xff]
    %v276 = vld [vmem:[#allocation8 + $0xb8] sm:$0xff]
    %v277 = vld [vmem:[#allocation8 + $0xc0] sm:$0xff]
    %v278 = vld [vmem:[#allocation8 + $0xc8] sm:$0xff]
    %v279 = vld [vmem:[#allocation8 + $0xd0] sm:$0xff]
    %v280 = vld [vmem:[#allocation8 + $0xd8] sm:$0xff]
    %v281 = vld [vmem:[#allocation8 + $0xe0] sm:$0xff]
    %v282 = vld [vmem:[#allocation8 + $0xe8] sm:$0xff]
    %v283 = vld [vmem:[#allocation8 + $0xf0] sm:$0xff]
    %v284 = vld [vmem:[#allocation8 + $0xf8] sm:$0xff]
    %v285 = vld [vmem:[%s5] sm:$0xf]
    %v287 = vlaneseq
    %v288 = vshrl.u32 %v287, 7
    %v289 = vsub.s32 0, %v288
    %v290 = vrot.slane %v285, %v289
    %v291 = vlaneseq
    %v292 = vshrl.u32 %v291, 7
    %v293 = vsub.s32 1, %v292
    %v294 = vrot.slane %v285, %v293
    %v295 = vlaneseq
    %v296 = vshrl.u32 %v295, 7
    %v297 = vsub.s32 2, %v296
    %v298 = vrot.slane %v285, %v297
    %v299 = vlaneseq
    %v300 = vshrl.u32 %v299, 7
    %v301 = vsub.s32 3, %v300
    %v302 = vrot.slane %v285, %v301
    %v339 = vunpack.c.l.b16 %v253
    %v340 = vunpack.c.h.b16 %v253
    %v341 = vunpack.c.l.b16 %v254
    %v342 = vunpack.c.h.b16 %v254
    %v343 = vunpack.c.l.b16 %v255
    %v344 = vunpack.c.h.b16 %v255
    %v345 = vunpack.c.l.b16 %v256
    %v346 = vunpack.c.h.b16 %v256
    %v347 = vunpack.c.l.b16 %v257
    %v348 = vunpack.c.h.b16 %v257
    %v349 = vunpack.c.l.b16 %v258
    %v350 = vunpack.c.h.b16 %v258
    %v351 = vunpack.c.l.b16 %v259
    %v352 = vunpack.c.h.b16 %v259
    %v353 = vunpack.c.l.b16 %v260
    %v354 = vunpack.c.h.b16 %v260
    %v355 = vunpack.c.l.b16 %v261
    %v356 = vunpack.c.h.b16 %v261
    %v357 = vunpack.c.l.b16 %v262
    %v358 = vunpack.c.h.b16 %v262
    %v359 = vunpack.c.l.b16 %v263
    %v360 = vunpack.c.h.b16 %v263
    %v361 = vunpack.c.l.b16 %v264
    %v362 = vunpack.c.h.b16 %v264
    %v363 = vunpack.c.l.b16 %v265
    %v364 = vunpack.c.h.b16 %v265
    %v365 = vunpack.c.l.b16 %v266
    %v366 = vunpack.c.h.b16 %v266
    %v367 = vunpack.c.l.b16 %v267
    %v368 = vunpack.c.h.b16 %v267
    %v369 = vunpack.c.l.b16 %v268
    %v370 = vunpack.c.h.b16 %v268
    %v371 = vunpack.c.l.b16 %v269
    %v372 = vunpack.c.h.b16 %v269
    %v373 = vunpack.c.l.b16 %v270
    %v374 = vunpack.c.h.b16 %v270
    %v375 = vunpack.c.l.b16 %v271
    %v376 = vunpack.c.h.b16 %v271
    %v377 = vunpack.c.l.b16 %v272
    %v378 = vunpack.c.h.b16 %v272
    %v379 = vunpack.c.l.b16 %v273
    %v380 = vunpack.c.h.b16 %v273
    %v381 = vunpack.c.l.b16 %v274
    %v382 = vunpack.c.h.b16 %v274
    %v383 = vunpack.c.l.b16 %v275
    %v384 = vunpack.c.h.b16 %v275
    %v385 = vunpack.c.l.b16 %v276
    %v386 = vunpack.c.h.b16 %v276
    %v387 = vunpack.c.l.b16 %v277
    %v388 = vunpack.c.h.b16 %v277
    %v389 = vunpack.c.l.b16 %v278
    %v390 = vunpack.c.h.b16 %v278
    %v391 = vunpack.c.l.b16 %v279
    %v392 = vunpack.c.h.b16 %v279
    %v393 = vunpack.c.l.b16 %v280
    %v394 = vunpack.c.h.b16 %v280
    %v395 = vunpack.c.l.b16 %v281
    %v396 = vunpack.c.h.b16 %v281
    %v397 = vunpack.c.l.b16 %v282
    %v398 = vunpack.c.h.b16 %v282
    %v399 = vunpack.c.l.b16 %v283
    %v400 = vunpack.c.h.b16 %v283
    %v401 = vunpack.c.l.b16 %v284
    %v402 = vunpack.c.h.b16 %v284
    %v403 = vpack.c.b16 %v343, %v339
    %v404 = vpack.c.b16 %v344, %v340
    %v405 = vpack.c.b16 %v345, %v341
    %v406 = vpack.c.b16 %v346, %v342
    %v407 = vpack.c.b16 %v351, %v347
    %v408 = vpack.c.b16 %v352, %v348
    %v409 = vpack.c.b16 %v353, %v349
    %v410 = vpack.c.b16 %v354, %v350
    %v411 = vpack.c.b16 %v359, %v355
    %v412 = vpack.c.b16 %v360, %v356
    %v413 = vpack.c.b16 %v361, %v357
    %v414 = vpack.c.b16 %v362, %v358
    %v415 = vpack.c.b16 %v367, %v363
    %v416 = vpack.c.b16 %v368, %v364
    %v417 = vpack.c.b16 %v369, %v365
    %v418 = vpack.c.b16 %v370, %v366
    %v419 = vpack.c.b16 %v375, %v371
    %v420 = vpack.c.b16 %v376, %v372
    %v421 = vpack.c.b16 %v377, %v373
    %v422 = vpack.c.b16 %v378, %v374
    %v423 = vpack.c.b16 %v383, %v379
    %v424 = vpack.c.b16 %v384, %v380
    %v425 = vpack.c.b16 %v385, %v381
    %v426 = vpack.c.b16 %v386, %v382
    %v427 = vpack.c.b16 %v391, %v387
    %v428 = vpack.c.b16 %v392, %v388
    %v429 = vpack.c.b16 %v393, %v389
    %v430 = vpack.c.b16 %v394, %v390
    %v431 = vpack.c.b16 %v399, %v395
    %v432 = vpack.c.b16 %v400, %v396
    %v433 = vpack.c.b16 %v401, %v397
    %v434 = vpack.c.b16 %v402, %v398
    %467 = vmatprep.subr.bf16.mxu0 %v404
    %468 = vmatpush1.bf16.msra.mxu0 %v403
    %469 = vmatprep.subr.bf16.mxu0 %v408
    %470 = vmatpush1.bf16.msra.mxu0 %v407
    %471 = vmatprep.subr.bf16.mxu0 %v412
    %472 = vmatpush1.bf16.msra.mxu0 %v411
    %473 = vmatprep.subr.bf16.mxu0 %v416
    %474 = vmatpush1.bf16.msra.mxu0 %v415
    %475 = vmatprep.subr.bf16.mxu0 %v420
    %476 = vmatpush1.bf16.msra.mxu0 %v419
    %477 = vmatprep.subr.bf16.mxu0 %v424
    %478 = vmatpush1.bf16.msra.mxu0 %v423
    %479 = vmatprep.subr.bf16.mxu0 %v428
    %480 = vmatpush1.bf16.msra.mxu0 %v427
    %481 = vmatprep.subr.bf16.mxu0 %v432
    %482 = vmatpush1.bf16.msra.mxu0 %v431
    %483 = vmatprep.subr.bf16.mxu0 0
    %484 = vmatpush1.bf16.msra.mxu0 0
    %485 = vmatprep.subr.bf16.mxu0 0
    %486 = vmatpush1.bf16.msra.mxu0 0
    %487 = vmatprep.subr.bf16.mxu0 0
    %488 = vmatpush1.bf16.msra.mxu0 0
    %489 = vmatprep.subr.bf16.mxu0 0
    %490 = vmatpush1.bf16.msra.mxu0 0
    %491 = vmatprep.subr.bf16.mxu0 0
    %492 = vmatpush1.bf16.msra.mxu0 0
    %493 = vmatprep.subr.bf16.mxu0 0
    %494 = vmatpush1.bf16.msra.mxu0 0
    %495 = vmatprep.subr.bf16.mxu0 0
    %496 = vmatpush1.bf16.msra.mxu0 0
    %497 = vmatprep.subr.bf16.mxu0 0
    %498 = vmatpush1.bf16.msra.mxu0 0
    %499 = vmatprep.mubr.bf16.mxu0 0
    %500 = vmatmul.mubr.bf16.gmra.mrb[0].mxu0 %v252
    %v501 = vpop.f32.mrb[0].mxu0
    %v502 = vadd.f32 %v290, %v501
    %v503 = vpop.f32.mrb[0].mxu0
    %v504 = vadd.f32 %v294, %v503
    %v505 = vpop.f32.mrb[0].mxu0
    %v506 = vadd.f32 %v290, %v505
    %v507 = vpop.f32.mrb[0].mxu0
    %v508 = vadd.f32 %v294, %v507
    %509 = vdwg.mxu0
    %510 = vmatprep.subr.bf16.mxu0 %v406
    %511 = vmatpush1.bf16.msra.mxu0 %v405
    %512 = vmatprep.subr.bf16.mxu0 %v410
    %513 = vmatpush1.bf16.msra.mxu0 %v409
    %514 = vmatprep.subr.bf16.mxu0 %v414
    %515 = vmatpush1.bf16.msra.mxu0 %v413
    %516 = vmatprep.subr.bf16.mxu0 %v418
    %517 = vmatpush1.bf16.msra.mxu0 %v417
    %518 = vmatprep.subr.bf16.mxu0 %v422
    %519 = vmatpush1.bf16.msra.mxu0 %v421
    %520 = vmatprep.subr.bf16.mxu0 %v426
    %521 = vmatpush1.bf16.msra.mxu0 %v425
    %522 = vmatprep.subr.bf16.mxu0 %v430
    %523 = vmatpush1.bf16.msra.mxu0 %v429
    %524 = vmatprep.subr.bf16.mxu0 %v434
    %525 = vmatpush1.bf16.msra.mxu0 %v433
    %526 = vmatprep.subr.bf16.mxu0 0
    %527 = vmatpush1.bf16.msra.mxu0 0
    %528 = vmatprep.subr.bf16.mxu0 0
    %529 = vmatpush1.bf16.msra.mxu0 0
    %530 = vmatprep.subr.bf16.mxu0 0
    %531 = vmatpush1.bf16.msra.mxu0 0
    %532 = vmatprep.subr.bf16.mxu0 0
    %533 = vmatpush1.bf16.msra.mxu0 0
    %534 = vmatprep.subr.bf16.mxu0 0
    %535 = vmatpush1.bf16.msra.mxu0 0
    %536 = vmatprep.subr.bf16.mxu0 0
    %537 = vmatpush1.bf16.msra.mxu0 0
    %538 = vmatprep.subr.bf16.mxu0 0
    %539 = vmatpush1.bf16.msra.mxu0 0
    %540 = vmatprep.subr.bf16.mxu0 0
    %541 = vmatpush1.bf16.msra.mxu0 0
    %542 = vmatprep.mubr.bf16.mxu0 0
    %543 = vmatmul.mubr.bf16.gmra.mrb[0].mxu0 %v252
    %v544 = vpop.f32.mrb[0].mxu0
    %v545 = vadd.f32 %v298, %v544
    %v546 = vpop.f32.mrb[0].mxu0
    %v547 = vadd.f32 %v302, %v546
    %v548 = vpop.f32.mrb[0].mxu0
    %v549 = vadd.f32 %v298, %v548
    %v550 = vpop.f32.mrb[0].mxu0
    %v551 = vadd.f32 %v302, %v550
    %552 = vdwg.mxu0
    %553 = vmax.xlane.f32.xlu0 %v502
    %v554 = vpop.xlane.xlu0 %553
    %555 = vmax.xlane.f32.xlu0 %v506
    %v556 = vpop.xlane.xlu0 %555
    %v557 = vsub.f32 %v502, %v554
    %v558 = vsub.f32 %v506, %v556
    %v559 = vmul.f32 %v557, 1.442695
    %v560 = vpow.pop %v559
    %v561 = vmul.f32 %v558, 1.442695
    %v562 = vpow.pop %v561
    %563 = vadd.xlane.f32.xlu0 %v560
    %v564 = vpop.xlane.xlu0 %563
    %565 = vadd.xlane.f32.xlu0 %v562
    %v566 = vpop.xlane.xlu0 %565
    %v567 = vlog2.pop %v564
    %v568 = vmul.f32 %v567, 0.6931472
    %v569 = vlog2.pop %v566
    %v570 = vmul.f32 %v569, 0.6931472
    %v571 = vadd.f32 %v554, %v568
    %v572 = vadd.f32 %v556, %v570
    %v573 = vsub.f32 %v502, %v571
    %v574 = vsub.f32 %v506, %v572
    %v575 = vpack.c.bf16 %v574, %v573
    %v577 = vunpack.c.l.b16 %v575
    %v578 = vunpack.c.h.b16 %v575
    %v579 = vpack.c.b16 %v577, %v577
    %v580 = vpack.c.b16 %v578, %v578
    %583 = vst [vmem:[#allocation10] sm:$0xf] %v579
    %584 = vst [vmem:[#allocation10 + $0x10] sm:$0xf] %v580
    %585 = vmax.xlane.f32.xlu0 %v504
    %v586 = vpop.xlane.xlu0 %585
    %587 = vmax.xlane.f32.xlu0 %v508
    %v588 = vpop.xlane.xlu0 %587
    %v589 = vsub.f32 %v504, %v586
    %v590 = vsub.f32 %v508, %v588
    %v591 = vmul.f32 %v589, 1.442695
    %v592 = vpow.pop %v591
    %v593 = vmul.f32 %v590, 1.442695
    %v594 = vpow.pop %v593
    %595 = vadd.xlane.f32.xlu0 %v592
    %v596 = vpop.xlane.xlu0 %595
    %597 = vadd.xlane.f32.xlu0 %v594
    %v598 = vpop.xlane.xlu0 %597
    %v599 = vlog2.pop %v596
    %v600 = vmul.f32 %v599, 0.6931472
    %v601 = vlog2.pop %v598
    %v602 = vmul.f32 %v601, 0.6931472
    %v603 = vadd.f32 %v586, %v600
    %v604 = vadd.f32 %v588, %v602
    %v605 = vsub.f32 %v504, %v603
    %v606 = vsub.f32 %v508, %v604
    %v607 = vpack.c.bf16 %v606, %v605
    %v609 = vunpack.c.l.b16 %v607
    %v610 = vunpack.c.h.b16 %v607
    %v611 = vpack.c.b16 %v609, %v609
    %v612 = vpack.c.b16 %v610, %v610
    %615 = vst [vmem:[#allocation10 + $0x4] sm:$0xf] %v611
    %616 = vst [vmem:[#allocation10 + $0x14] sm:$0xf] %v612
    %617 = vmax.xlane.f32.xlu0 %v545
    %v618 = vpop.xlane.xlu0 %617
    %619 = vmax.xlane.f32.xlu0 %v549
    %v620 = vpop.xlane.xlu0 %619
    %v621 = vsub.f32 %v545, %v618
    %v622 = vsub.f32 %v549, %v620
    %v623 = vmul.f32 %v621, 1.442695
    %v624 = vpow.pop %v623
    %v625 = vmul.f32 %v622, 1.442695
    %v626 = vpow.pop %v625
    %627 = vadd.xlane.f32.xlu0 %v624
    %v628 = vpop.xlane.xlu0 %627
    %629 = vadd.xlane.f32.xlu0 %v626
    %v630 = vpop.xlane.xlu0 %629
    %v631 = vlog2.pop %v628
    %v632 = vmul.f32 %v631, 0.6931472
    %v633 = vlog2.pop %v630
    %v634 = vmul.f32 %v633, 0.6931472
    %v635 = vadd.f32 %v618, %v632
    %v636 = vadd.f32 %v620, %v634
    %v637 = vsub.f32 %v545, %v635
    %v638 = vsub.f32 %v549, %v636
    %v639 = vpack.c.bf16 %v638, %v637
    %v641 = vunpack.c.l.b16 %v639
    %v642 = vunpack.c.h.b16 %v639
    %v643 = vpack.c.b16 %v641, %v641
    %v644 = vpack.c.b16 %v642, %v642
    %647 = vst [vmem:[#allocation10 + $0x8] sm:$0xf] %v643
    %648 = vst [vmem:[#allocation10 + $0x18] sm:$0xf] %v644
    %649 = vmax.xlane.f32.xlu0 %v547
    %v650 = vpop.xlane.xlu0 %649
    %651 = vmax.xlane.f32.xlu0 %v551
    %v652 = vpop.xlane.xlu0 %651
    %v653 = vsub.f32 %v547, %v650
    %v654 = vsub.f32 %v551, %v652
    %v655 = vmul.f32 %v653, 1.442695
    %v656 = vpow.pop %v655
    %v657 = vmul.f32 %v654, 1.442695
    %v658 = vpow.pop %v657
    %659 = vadd.xlane.f32.xlu0 %v656
    %v660 = vpop.xlane.xlu0 %659
    %661 = vadd.xlane.f32.xlu0 %v658
    %v662 = vpop.xlane.xlu0 %661
    %v663 = vlog2.pop %v660
    %v664 = vmul.f32 %v663, 0.6931472
    %v665 = vlog2.pop %v662
    %v666 = vmul.f32 %v665, 0.6931472
    %v667 = vadd.f32 %v650, %v664
    %v668 = vadd.f32 %v652, %v666
    %v669 = vsub.f32 %v547, %v667
    %v670 = vsub.f32 %v551, %v668
    %v671 = vpack.c.bf16 %v670, %v669
    %v673 = vunpack.c.l.b16 %v671
    %v674 = vunpack.c.h.b16 %v671
    %v675 = vpack.c.b16 %v673, %v673
    %v676 = vpack.c.b16 %v674, %v674
    %679 = vst [vmem:[#allocation10 + $0xc] sm:$0xf] %v675
    %680 = vst [vmem:[#allocation10 + $0x1c] sm:$0xf] %v676
    // Predicated region
    $region42: #{tpu_custom_call.1} parent=1 // pred_check
      _
    $region43: #{tpu_custom_call.1} parent=1 // pred_check_branch
      %682 = sbr.rel (0) target = $region45
    $region44: #{tpu_custom_call.1} parent=1 // pred_region
      %s684 = ssub.s32 512, 512
      %685 = vsyncadd [#allocation4], %s684
      %s686 = sshll.u32 [#allocation10], 4
      %s687 = int_to_ptr.vmem [resolvable:$true] %s686
      %692 = dma.vmem_to_hbm [thread:$0]  %s687, 512, %s6, [#allocation4], 256, 256, 16
    $region45: #{tpu_custom_call.1} parent=1 // pred_fallthru
      _
    // Predicated region
    $region46: #{tpu_custom_call.1} parent=1 // pred_check
      _
    $region47: #{tpu_custom_call.1} parent=1 // pred_check_branch
      %694 = sbr.rel (0) target = $region49
    $region48: #{tpu_custom_call.1} parent=1 // pred_region
      %695 = dma.done [#allocation4], 512
    $region49: #{tpu_custom_call.1} parent=1 // pred_fallthru
      _
    %696 = vsyncpa [#allocation3], 1
    %697 = vsyncpa [#allocation6], 1
    %698 = vsyncpa [#allocation9], 1
    %699 = vsyncpa [#allocation4], 1

</llo_original>
